<compile_context>
chip_gen: v5e
topology: v5e:2x2
jax: 0.10.0
libtpu: 0.0.40
codegen_flags: <defaults>
</compile_context>

<pallas_src>
import functools

import jax
import jax.numpy as jnp
from jax.experimental import pallas as pl
from jax.experimental.pallas import tpu as pltpu


def _keep_mask(seed_u32, row0, col0, tm, tn, p):
    """Counter-based hash -> boolean keep-mask of shape (tm, tn).

    Keyed on the *global* (row, col) element index plus the seed, so the mask
    is tiling-invariant and unique per element. Uses only plain jnp ops so it
    lowers both on TPU (Mosaic) and under the CPU interpreter.
    """
    thresh = min(int(round(p * 4294967296.0)), 4294967295)
    rows = (jax.lax.broadcasted_iota(jnp.int32, (tm, 1), 0) + row0).astype(jnp.uint32)
    cols = (jax.lax.broadcasted_iota(jnp.int32, (1, tn), 1) + col0).astype(jnp.uint32)
    h = (rows * jnp.uint32(0x9E3779B1)
         + cols * jnp.uint32(0x85EBCA6B)
         + seed_u32 * jnp.uint32(0xC2B2AE35))
    h = h ^ (h >> 16)
    h = h * jnp.uint32(0x7FEB352D)
    h = h ^ (h >> 15)
    h = h * jnp.uint32(0x846CA68B)
    h = h ^ (h >> 16)
    return h >= jnp.uint32(thresh)


def _kernel_single_k(seed_ref, x_ref, w_ref, b_ref, o_ref, *,
                     p, training, negative_slope, tm, tn):
    """Fast path for in_dim <= tk: no K reduction, no VMEM accumulator."""
    xv = x_ref[...]
    wv = w_ref[...]
    if xv.dtype != wv.dtype:
        xv = xv.astype(wv.dtype)          # reconcile on the small activation tile
    y = jnp.dot(xv, wv, preferred_element_type=jnp.float32)
    y = y + b_ref[...].astype(jnp.float32)
    y = jnp.where(y > 0, y, jnp.float32(negative_slope) * y)
    if training and p > 0.0:
        row0 = pl.program_id(0) * tm      # top-level program_id (interpret-safe)
        col0 = pl.program_id(1) * tn
        keep = _keep_mask(seed_ref[0].astype(jnp.uint32), row0, col0, tm, tn, p)
        y = jnp.where(keep, y * jnp.float32(1.0 / (1.0 - p)), jnp.float32(0.0))
    o_ref[...] = y.astype(o_ref.dtype)


def _kernel_k_reduce(seed_ref, x_ref, w_ref, b_ref, o_ref, acc_ref, *,
                     p, training, negative_slope, tm, tn):
    """General path: K reduction into a resident f32 VMEM accumulator."""
    k = pl.program_id(2)
    nk = pl.num_programs(2)
    # Hoist every pl.program_id / scalar-prefetch read out of pl.when bodies:
    # the CPU-interpret fallback cannot lower program_id nested in a cond.
    if training and p > 0.0:
        row0 = pl.program_id(0) * tm
        col0 = pl.program_id(1) * tn
        seed_u32 = seed_ref[0].astype(jnp.uint32)

    xv = x_ref[...]
    wv = w_ref[...]
    if xv.dtype != wv.dtype:
        xv = xv.astype(wv.dtype)
    part = jnp.dot(xv, wv, preferred_element_type=jnp.float32)

    @pl.when(k == 0)
    def _():                              # no separate zero-init pass
        acc_ref[...] = part

    @pl.when(k != 0)
    def _():
        acc_ref[...] += part

    @pl.when(k == nk - 1)
    def _():
        y = acc_ref[...] + b_ref[...].astype(jnp.float32)
        y = jnp.where(y > 0, y, jnp.float32(negative_slope) * y)
        if training and p > 0.0:
            keep = _keep_mask(seed_u32, row0, col0, tm, tn, p)
            y = jnp.where(keep, y * jnp.float32(1.0 / (1.0 - p)), jnp.float32(0.0))
        o_ref[...] = y.astype(o_ref.dtype)


def _pick_tile(dim, pref, align):
    """Largest tile <= pref that divides dim (stepping down by 2); else full dim."""
    if dim <= pref:
        return dim
    t = pref
    while t >= align:
        if dim % t == 0:
            return t
        t //= 2
    return dim


def _sublane_align(dtype):
    return {1: 32, 2: 16, 4: 8}.get(jnp.dtype(dtype).itemsize, 8)


def _vmem_limit_bytes():
    """Generation-aware scoped-VMEM budget (40 MiB on v7x, 48 MiB on v5e/v6e)."""
    try:
        cap = int(pltpu.get_tpu_info().vmem_capacity_bytes)
    except Exception:
        cap = 64 * 1024 * 1024            # assume the smallest (v7x per-TC)
    return min(48 * 1024 * 1024, (cap * 5) // 8)


def decoder_block(x, w, b, *, p=0.1, training=True, seed=0):
    """x: [B, in_dim], w: [in_dim, out_dim], b: [out_dim] -> [B, out_dim]."""
    B, in_dim = x.shape
    in_dim_w, out_dim = w.shape
    assert in_dim_w == in_dim
    if training:
        assert 0.0 <= p < 1.0, "dropout rate must be in [0, 1) in training mode"

    out_dtype = x.dtype

    # Large tm (toward the full batch) so the streamed W operand is re-read as
    # few times as possible; tk/tn sized so the double-buffered working set
    # (~18 MiB worst case at f32) stays well under v7x's 64 MiB physical VMEM.
    tm = _pick_tile(B, 1024, _sublane_align(x.dtype))
    tk = _pick_tile(in_dim, 1024, 128)
    tn = _pick_tile(out_dim, 512, 128)

    grid_m = B // tm
    grid_n = out_dim // tn
    # v7x has 2 TensorCores: keep at least one "parallel" axis with extent >= 2.
    if grid_m == 1 and grid_n == 1 and tn % 256 == 0:
        tn //= 2
        grid_n = out_dim // tn
    grid_k = in_dim // tk

    b2 = b.reshape(1, out_dim)
    seed_arr = jnp.asarray([seed], dtype=jnp.int32)

    out_itemsize = jnp.dtype(out_dtype).itemsize
    cost = pl.CostEstimate(
        flops=2 * B * in_dim * out_dim,
        transcendentals=0,
        # Truthful traffic: x is streamed grid_n times, W (and bias) grid_m times.
        bytes_accessed=(grid_n * B * in_dim * x.dtype.itemsize
                        + grid_m * in_dim * out_dim * w.dtype.itemsize
                        + grid_m * out_dim * b.dtype.itemsize
                        + B * out_dim * out_itemsize))

    common = dict(p=float(p), training=bool(training), negative_slope=0.2,
                  tm=tm, tn=tn)

    if grid_k == 1:
        kernel = functools.partial(_kernel_single_k, **common)
        grid = (grid_m, grid_n)
        in_specs = [
            pl.BlockSpec((tm, in_dim), lambda i, j, s: (i, 0)),
            pl.BlockSpec((in_dim, tn), lambda i, j, s: (0, j)),
            pl.BlockSpec((1, tn), lambda i, j, s: (0, j)),
        ]
        out_specs = pl.BlockSpec((tm, tn), lambda i, j, s: (i, j))
        scratch = []
        dims = ("parallel", "parallel")
    else:
        kernel = functools.partial(_kernel_k_reduce, **common)
        grid = (grid_m, grid_n, grid_k)
        in_specs = [
            pl.BlockSpec((tm, tk), lambda i, j, k, s: (i, k)),
            pl.BlockSpec((tk, tn), lambda i, j, k, s: (k, j)),
            pl.BlockSpec((1, tn), lambda i, j, k, s: (0, j)),
        ]
        out_specs = pl.BlockSpec((tm, tn), lambda i, j, k, s: (i, j))
        scratch = [pltpu.VMEM((tm, tn), jnp.float32)]
        dims = ("parallel", "parallel", "arbitrary")

    return pl.pallas_call(
        kernel,
        out_shape=jax.ShapeDtypeStruct((B, out_dim), out_dtype),
        grid_spec=pltpu.PrefetchScalarGridSpec(
            num_scalar_prefetch=1,          # seed lands in SMEM
            grid=grid,
            in_specs=in_specs,
            out_specs=out_specs,
            scratch_shapes=scratch,
        ),
        compiler_params=pltpu.CompilerParams(
            dimension_semantics=dims,
            vmem_limit_bytes=_vmem_limit_bytes(),
        ),
        cost_estimate=cost,
    )(seed_arr, x, w, b2)


if __name__ == "__main__":
    # Small shapes consistent with the module: in_dim=32, out_dim=128, batch=8.
    B, in_dim, out_dim = 8, 32, 128
    do_rate = 0.1

    key = jax.random.PRNGKey(0)
    kx, kw, kb = jax.random.split(key, 3)

    x = jax.random.normal(kx, (B, in_dim), dtype=jnp.float32)
    # Param init mimicking nn.Linear: U(-1/sqrt(in_dim), 1/sqrt(in_dim)).
    bound = 1.0 / float(in_dim) ** 0.5
    w = jax.random.uniform(kw, (in_dim, out_dim), dtype=jnp.float32,
                           minval=-bound, maxval=bound)
    b = jax.random.uniform(kb, (out_dim,), dtype=jnp.float32,
                           minval=-bound, maxval=bound)

    # Pure-JAX reference (Linear + LeakyReLU, no dropout).
    ref = x @ w + b
    ref = jnp.where(ref > 0, ref, 0.2 * ref)

    # Eval-mode run (dropout disabled).
    out_eval = decoder_block(x, w, b, p=do_rate, training=False)
    jax.block_until_ready(out_eval)
    assert out_eval.shape == (B, out_dim)
    assert jnp.allclose(out_eval, ref, atol=1e-5, rtol=1e-5), "eval-mode mismatch"

    # Training-mode run (dropout active). Kept entries must equal ref/(1-p),
    # dropped entries are exactly 0, and the mask must not be degenerate.
    # TODO(synk): dropout uses a counter-based hash RNG, not torch's stream.
    out_train = decoder_block(x, w, b, p=do_rate, training=True, seed=42)
    jax.block_until_ready(out_train)
    assert out_train.shape == (B, out_dim)
    scaled = ref / (1.0 - do_rate)
    kept = out_train != 0
    assert jnp.allclose(jnp.where(kept, out_train - scaled, 0.0), 0.0,
                        atol=1e-4), "training-mode kept values mismatch"
    n_drop = int(jnp.sum(~kept))
    assert 0 < n_drop < B * out_dim, "dropout mask looks degenerate"

    print("KERNEL_OK")
</pallas_src>

<mosaic_0001>
module attributes {stable_mosaic.version = 11 : i64} {
  func.func @_kernel_single_k(%arg0: i32, %arg1: i32, %arg2: memref<1xi32, #tpu.memory_space<smem>>, %arg3: memref<8x32xf32, #tpu.memory_space<vmem>>, %arg4: memref<32x128xf32, #tpu.memory_space<vmem>>, %arg5: memref<1x128xf32, #tpu.memory_space<vmem>>, %arg6: memref<8x128xf32, #tpu.memory_space<vmem>>) attributes {dimension_semantics = [#tpu.dimension_semantics<parallel>, #tpu.dimension_semantics<parallel>], iteration_bounds = array<i64: 1, 1>, scalar_prefetch = 1 : i64, scratch_operands = 0 : i64, tpu.core_type = #tpu.core_type<tc>, window_params = [{transform_indices = @transform_0, window_bounds = array<i64: 8, 32>}, {transform_indices = @transform_1, window_bounds = array<i64: 32, 128>}, {transform_indices = @transform_2, window_bounds = array<i64: 1, 128>}, {transform_indices = @transform_3, window_bounds = array<i64: 8, 128>}]} {
    %c0 = arith.constant 0 : index
    %c0_0 = arith.constant 0 : index
    %0 = vector.load %arg3[%c0, %c0_0] : memref<8x32xf32, #tpu.memory_space<vmem>>, vector<8x32xf32>
    %c0_1 = arith.constant 0 : index
    %c0_2 = arith.constant 0 : index
    %1 = vector.load %arg4[%c0_1, %c0_2] : memref<32x128xf32, #tpu.memory_space<vmem>>, vector<32x128xf32>
    %cst = arith.constant dense<0.000000e+00> : vector<8x128xf32>
    %2 = tpu.matmul %0, %1, %cst {dimension_numbers = #tpu.dot_dimension_numbers<[1], [0], [0], [1], [0, 0, 1, 1], [], []>} : vector<8x32xf32>, vector<32x128xf32>, vector<8x128xf32> -> vector<8x128xf32>
    %c0_3 = arith.constant 0 : index
    %c0_4 = arith.constant 0 : index
    %3 = vector.load %arg5[%c0_3, %c0_4] : memref<1x128xf32, #tpu.memory_space<vmem>>, vector<1x128xf32>
    %4 = vector.broadcast %3 : vector<1x128xf32> to vector<8x128xf32>
    %5 = arith.addf %2, %4 : vector<8x128xf32>
    %cst_5 = arith.constant 0.000000e+00 : f32
    %6 = vector.broadcast %cst_5 : f32 to vector<8x128xf32>
    %7 = arith.cmpf ogt, %5, %6 : vector<8x128xf32>
    %cst_6 = arith.constant 2.000000e-01 : f32
    %8 = vector.broadcast %cst_6 : f32 to vector<8x128xf32>
    %9 = arith.mulf %8, %5 : vector<8x128xf32>
    %10 = arith.select %7, %5, %9 : vector<8x128xi1>, vector<8x128xf32>
    %c0_7 = arith.constant 0 : index
    %c0_8 = arith.constant 0 : index
    %11 = vector.load %arg6[%c0_7, %c0_8] : memref<8x128xf32, #tpu.memory_space<vmem>>, vector<8x128xf32>
    tpu.vector_store %arg6[%c0_7, %c0_8], %10 {strides = array<i32>} : memref<8x128xf32, #tpu.memory_space<vmem>>, vector<8x128xf32>,
    return
  }
  func.func @transform_0(%arg0: i32, %arg1: i32, %arg2: memref<1xi32, #tpu.memory_space<smem>>) -> (i32, i32) {
    %c0_i32 = arith.constant 0 : i32
    %c0_i32_0 = arith.constant 0 : i32
    return %arg0, %c0_i32 : i32, i32
  }
  func.func @transform_1(%arg0: i32, %arg1: i32, %arg2: memref<1xi32, #tpu.memory_space<smem>>) -> (i32, i32) {
    %c0_i32 = arith.constant 0 : i32
    %c0_i32_0 = arith.constant 0 : i32
    return %c0_i32, %arg1 : i32, i32
  }
  func.func @transform_2(%arg0: i32, %arg1: i32, %arg2: memref<1xi32, #tpu.memory_space<smem>>) -> (i32, i32) {
    %c0_i32 = arith.constant 0 : i32
    %c0_i32_0 = arith.constant 0 : i32
    return %c0_i32, %arg1 : i32, i32
  }
  func.func @transform_3(%arg0: i32, %arg1: i32, %arg2: memref<1xi32, #tpu.memory_space<smem>>) -> (i32, i32) {
    %c0_i32 = arith.constant 0 : i32
    return %arg0, %arg1 : i32, i32
  }
}

</mosaic_0001>

<llo_original>
// kernel: tpu_custom_call.1
$region0: #{tpu_custom_call.1}
  #allocation0 [shape = 'u32[]', space=smem, size = 0x4, offset = 0x4, fixed_abs, tag = 'smem constant byte address 0x4 - core index']
  #allocation1 [shape = 'u32[72,128]{1,0:T(1,128)}', space=vmem, size = 0x9000, scoped, tag = 'internal scratch']
  #allocation2 [shape = 's32[1]{0}', space=sflag, size = 0x4, scoped, tag = 'scoped memory for tpu_custom_call.1']
  #allocation3 [shape = 's32[1]{0:T(128)S(6)}', space=smem, size = 0x200, scoped, tag = 'prefetched SMEM operand 0']
  %s0 = inlined_call_operand.<no memory space> [shape: s32[1], index: 0, kind: input, shape index: {}]
  %s1 = inlined_call_operand.hbm [shape: f32[8,32], index: 1, kind: input, shape index: {}]
  %s2 = inlined_call_operand.hbm [shape: f32[32,128], index: 2, kind: input, shape index: {}]
  %s3 = inlined_call_operand.vmem [shape: f32[1,128], index: 3, kind: input, shape index: {}]
  %s4 = inlined_call_operand.hbm [shape: f32[8,128], index: 4, kind: output, shape index: {}]
  %s5 = sld [smem:[#allocation0]]
  $region30: #{tpu_custom_call.1} parent=0
    _
  %s7 = ssub.s32 1, %s5
  %s8 = scalar_select 0, %s7, %s5
  %9 = sst [smem:[#allocation3]] %s0
  $region1: #{tpu_custom_call.1} parent=0
    #allocation4 [shape = 'u8[4096]{0}', space=vmem, size = 0x1000, scoped, tag = 'input window, operand 1, single buffered']
    #allocation5 [shape = 's32[1]{0}', space=sflag, size = 0x4, scoped, tag = 'scoped memory for tpu_custom_call.1']
    #allocation6 [shape = 's32[1]{0}', space=sflag, size = 0x4, scoped, tag = 'scoped memory for tpu_custom_call.1']
    #allocation7 [shape = 'u8[16384]{0}', space=vmem, size = 0x4000, scoped, tag = 'input window, operand 2, single buffered']
    #allocation8 [shape = 's32[1]{0}', space=sflag, size = 0x4, scoped, tag = 'scoped memory for tpu_custom_call.1']
    #allocation9 [shape = 'u8[4096]{0}', space=vmem, size = 0x1000, scoped, tag = 'output window, operand 0, single buffered']
    %10 = vsyncpa [#allocation5], 0
    %11 = vsyncpa [#allocation8], 0
    %12 = vsyncpa [#allocation6], 0
    // Predicated region
    $region2: #{tpu_custom_call.1} parent=1 // pred_check
      _
    $region3: #{tpu_custom_call.1} parent=1 // pred_check_branch
      %14 = sbr.rel (0) target = $region5
    $region4: #{tpu_custom_call.1} parent=1 // pred_region
      %16 = vsyncadd [#allocation5], 0
      %s18 = sshll.u32 %s1, 4
      %s19 = int_to_ptr.hbm [resolvable:$true] %s18
      %s20 = sshll.u32 [#allocation4], 4
      %s21 = int_to_ptr.vmem [resolvable:$true] %s20
      %23 = dma.hbm_to_vmem [thread:$0]  %s19, 128, %s21, [#allocation5]
    $region5: #{tpu_custom_call.1} parent=1 // pred_fallthru
      _
    // Predicated region
    $region6: #{tpu_custom_call.1} parent=1 // pred_check
      _
    $region7: #{tpu_custom_call.1} parent=1 // pred_check_branch
      %25 = sbr.rel (0) target = $region9
    $region8: #{tpu_custom_call.1} parent=1 // pred_region
      %27 = vsyncadd [#allocation8], 0
      %s28 = sshll.u32 %s2, 4
      %s29 = int_to_ptr.hbm [resolvable:$true] %s28
      %s30 = sshll.u32 [#allocation7], 4
      %s31 = int_to_ptr.vmem [resolvable:$true] %s30
      %36 = dma.hbm_to_vmem [thread:$0]  %s29, 512, %s31, [#allocation8], 128, 128, 8
    $region9: #{tpu_custom_call.1} parent=1 // pred_fallthru
      _
    // Predicated region
    $region10: #{tpu_custom_call.1} parent=1 // pred_check
      _
    $region11: #{tpu_custom_call.1} parent=1 // pred_check_branch
      %38 = sbr.rel (0) target = $region13
    $region12: #{tpu_custom_call.1} parent=1 // pred_region
      _
    $region13: #{tpu_custom_call.1} parent=1 // pred_fallthru
      _
    // Predicated region
    $region14: #{tpu_custom_call.1} parent=1 // pred_check
      _
    $region15: #{tpu_custom_call.1} parent=1 // pred_check_branch
      %40 = sbr.rel (0) target = $region17
    $region16: #{tpu_custom_call.1} parent=1 // pred_region
      %42 = dma.done [#allocation5], 128
    $region17: #{tpu_custom_call.1} parent=1 // pred_fallthru
      _
    // Predicated region
    $region18: #{tpu_custom_call.1} parent=1 // pred_check
      _
    $region19: #{tpu_custom_call.1} parent=1 // pred_check_branch
      %44 = sbr.rel (0) target = $region21
    $region20: #{tpu_custom_call.1} parent=1 // pred_region
      %46 = dma.done [#allocation8], 512
    $region21: #{tpu_custom_call.1} parent=1 // pred_fallthru
      _
    %v47 = vld [vmem:[#allocation4] sm:$0xff]
    %v48 = vld [vmem:[#allocation7] sm:$0xff]
    %v49 = vld [vmem:[#allocation7 + $0x8] sm:$0xff]
    %v50 = vld [vmem:[#allocation7 + $0x10] sm:$0xff]
    %v51 = vld [vmem:[#allocation7 + $0x18] sm:$0xff]
    %v52 = vld [vmem:[%s3] sm:$0x1]
    %v54 = vperm.slane %v52, 0
    %vm56 = vcmask 261120
    %v58 = vsel %vm56, %v47, 0
    %60 = vmatpush.msra.mxu0 0.0
    %61 = vmatpush.msra.mxu0 0.0
    %62 = vmatpush.msra.mxu0 0.0
    %63 = vmatpush.msra.mxu0 0.0
    %64 = vmatpush.msra.mxu0 0.0
    %65 = vmatpush.msra.mxu0 0.0
    %66 = vmatpush.msra.mxu0 0.0
    %67 = vmatpush.msra.mxu0 0.0
    %68 = vmatpush.msra.mxu0 0.0
    %69 = vmatpush.msra.mxu0 0.0
    %70 = vmatpush.msra.mxu0 0.0
    %71 = vmatpush.msra.mxu0 0.0
    %72 = vmatpush.msra.mxu0 %v51
    %73 = vmatpush.msra.mxu0 %v50
    %74 = vmatpush.msra.mxu0 %v49
    %75 = vmatpush.msra.mxu0 %v48
    %76 = vmatmul.f32.gmra.mxu0 %v58
    %v77 = vpop.f32.mrf.mxu0
    %v78 = vadd.f32 %v54, %v77
    %79 = vdwg.mxu0
    %vm80 = vcmp.gt.f32.partialorder %v78, 0.0
    %v81 = vmul.f32 %v78, 0.2
    %v82 = vsel %vm80, %v78, %v81
    %83 = vst [vmem:[#allocation9] sm:$0xff] %v82
    // Predicated region
    $region22: #{tpu_custom_call.1} parent=1 // pred_check
      _
    $region23: #{tpu_custom_call.1} parent=1 // pred_check_branch
      %85 = sbr.rel (0) target = $region25
    $region24: #{tpu_custom_call.1} parent=1 // pred_region
      %87 = vsyncadd [#allocation6], 0
      %s89 = sshll.u32 [#allocation9], 4
      %s90 = int_to_ptr.vmem [resolvable:$true] %s89
      %s91 = sshll.u32 %s4, 4
      %s92 = int_to_ptr.hbm [resolvable:$true] %s91
      %94 = dma.vmem_to_hbm [thread:$0]  %s90, 128, %s92, [#allocation6]
    $region25: #{tpu_custom_call.1} parent=1 // pred_fallthru
      _
    // Predicated region
    $region26: #{tpu_custom_call.1} parent=1 // pred_check
      _
    $region27: #{tpu_custom_call.1} parent=1 // pred_check_branch
      %96 = sbr.rel (0) target = $region29
    $region28: #{tpu_custom_call.1} parent=1 // pred_region
      %98 = dma.done [#allocation6], 128
    $region29: #{tpu_custom_call.1} parent=1 // pred_fallthru
      _
    %99 = vsyncpa [#allocation5], 1
    %100 = vsyncpa [#allocation8], 1
    %101 = vsyncpa [#allocation6], 1

</llo_original>
